<compile_context>
chip_gen: v5e
topology: v5e:2x2
jax: 0.10.0
libtpu: 0.0.40
codegen_flags: <defaults>
</compile_context>

<pallas_src>
import jax
import jax.numpy as jnp
from jax.experimental import pallas as pl
from jax.experimental.pallas import tpu as pltpu

# ----------------------------- model dims ----------------------------------
MAX_WORD_LEN = 16
VOCAB = 27                        # 26 letters + blank
NUM_ACTIONS = 26                  # num_outputs (one per letter)
HIDDEN = 128
FEATURES_DIM = 128
WORD_FLAT = MAX_WORD_LEN * VOCAB  # 432
OUT_PAD = 128                     # lane-dense padded output width


def _round_up(x, m):
    return ((x + m - 1) // m) * m


# ------------------------------ kernel --------------------------------------
def hangman_q_kernel(word_ref, guess_ref, mask_ref,
                     w1w_ref, w1g_ref, b1_ref,
                     w2_ref, b2_ref,
                     w3_ref, b3_ref,
                     out_ref):
    """Fused MLP feature extractor + policy head + action masking.

    word_ref  : [TB, WORD_FLAT]   flattened word one-hot
    guess_ref : [TB, NUM_ACTIONS] guessed-letters vector
    mask_ref  : [TB, OUT_PAD]     action mask, zero-padded to 128 lanes
    w1w/w1g   : [WORD_FLAT, H] / [NUM_ACTIONS, H]   (split first layer)
    b1        : [1, H]
    w2/b2     : [H, F] / [1, F]
    w3/b3     : [F, OUT_PAD] / [1, OUT_PAD]         (zero-padded head)
    out_ref   : [TB, OUT_PAD]     masked logits (padded)
    """
    # Layer 1: split contraction (word one-hot + guessed letters), ReLU.
    h1 = (jnp.dot(word_ref[...], w1w_ref[...], preferred_element_type=jnp.float32)
          + jnp.dot(guess_ref[...], w1g_ref[...], preferred_element_type=jnp.float32)
          + b1_ref[...])
    h1 = jnp.maximum(h1, 0.0)

    # Layer 2: Linear -> ReLU  (features_dim = 128)
    feats = jnp.dot(h1, w2_ref[...], preferred_element_type=jnp.float32) + b2_ref[...]
    feats = jnp.maximum(feats, 0.0)

    # Policy head (padded to 128 lanes).
    logits = jnp.dot(feats, w3_ref[...], preferred_element_type=jnp.float32) + b3_ref[...]

    # Action masking: logits + (mask == 0) * -1e9  (additive semantics preserved).
    out_ref[...] = jnp.where(mask_ref[...] == 0.0, logits - 1.0e9, logits)


# ------------------------------ wrapper --------------------------------------
def hangman_sac_q_forward(obs, params, *, max_tile=512):
    """obs: dict with 'word_state' [B,L,V] one-hot, 'guessed_letters' [B,26],
    'action_mask' [B,26]. Returns masked logits [B, NUM_ACTIONS]."""
    word = obs["word_state"].astype(jnp.float32)
    guessed = obs["guessed_letters"].astype(jnp.float32)
    action_mask = obs["action_mask"].astype(jnp.float32)

    B = word.shape[0]
    word_flat = word.reshape(B, WORD_FLAT)

    # Batch tiling: sublane-align, pick TB and pad B up to a multiple of TB.
    TB = max_tile
    Bp = _round_up(B, 8)
    if Bp < TB:
        TB = Bp
    else:
        Bp = _round_up(Bp, TB)
    pad_rows = Bp - B

    word_flat = jnp.pad(word_flat, ((0, pad_rows), (0, 0)))
    guessed = jnp.pad(guessed, ((0, pad_rows), (0, 0)))
    # Lane-dense mask: pad 26 -> 128 columns (padding sliced away afterwards).
    mask_p = jnp.pad(action_mask, ((0, pad_rows), (0, OUT_PAD - NUM_ACTIONS)))

    # Lane-dense policy head: pad w3/b3 columns 26 -> 128 with zeros.
    w3_p = jnp.pad(params["w3"], ((0, 0), (0, OUT_PAD - NUM_ACTIONS)))
    b3_p = jnp.pad(params["b3"], ((0, 0), (0, OUT_PAD - NUM_ACTIONS)))

    grid = (Bp // TB,)

    batch_spec = lambda cols: pl.BlockSpec((TB, cols), lambda i: (i, 0))
    weight_spec = lambda shape: pl.BlockSpec(shape, lambda i: (0, 0))

    out = pl.pallas_call(
        hangman_q_kernel,
        out_shape=jax.ShapeDtypeStruct((Bp, OUT_PAD), jnp.float32),
        grid=grid,
        in_specs=[
            batch_spec(WORD_FLAT),            # word one-hot
            batch_spec(NUM_ACTIONS),          # guessed letters
            batch_spec(OUT_PAD),              # action mask (padded)
            weight_spec((WORD_FLAT, HIDDEN)),  # w1 (word part)
            weight_spec((NUM_ACTIONS, HIDDEN)),  # w1 (guessed part)
            weight_spec((1, HIDDEN)),          # b1
            weight_spec((HIDDEN, FEATURES_DIM)),  # w2
            weight_spec((1, FEATURES_DIM)),    # b2
            weight_spec((FEATURES_DIM, OUT_PAD)),  # w3 (padded)
            weight_spec((1, OUT_PAD)),         # b3 (padded)
        ],
        out_specs=batch_spec(OUT_PAD),
        compiler_params=pltpu.CompilerParams(
            dimension_semantics=("parallel",)),
    )(
        word_flat, guessed, mask_p,
        params["w1w"], params["w1g"], params["b1"],
        params["w2"], params["b2"],
        w3_p, b3_p,
    )
    return out[:B, :NUM_ACTIONS]


# ------------------------- deterministic params ------------------------------
def init_params(key):
    k1, k2, k3 = jax.random.split(key, 3)

    def linear(k, fan_in, fan_out):
        scale = 1.0 / jnp.sqrt(jnp.float32(fan_in))
        w = jax.random.uniform(k, (fan_in, fan_out), jnp.float32, -scale, scale)
        b = jnp.zeros((1, fan_out), jnp.float32)
        return w, b

    obs_dim = WORD_FLAT + NUM_ACTIONS
    w1, b1 = linear(k1, obs_dim, HIDDEN)
    w2, b2 = linear(k2, HIDDEN, FEATURES_DIM)
    w3, b3 = linear(k3, FEATURES_DIM, NUM_ACTIONS)
    return {
        # first layer split into word / guessed parts (concat-free kernel input)
        "w1w": w1[:WORD_FLAT, :],
        "w1g": w1[WORD_FLAT:, :],
        "b1": b1,
        "w2": w2, "b2": b2,
        "w3": w3, "b3": b3,
    }


# -------------------------------- main ---------------------------------------
if __name__ == "__main__":
    key = jax.random.PRNGKey(0)
    kp, kw, kg, km = jax.random.split(key, 4)

    B = 2
    params = init_params(kp)

    # word_state: one-hot encoded partially-revealed word [B, MAX_LEN, VOCAB]
    word_ids = jax.random.randint(kw, (B, MAX_WORD_LEN), 0, VOCAB)
    word_state = jax.nn.one_hot(word_ids, VOCAB, dtype=jnp.float32)

    # guessed_letters: 0/1 vector of previously guessed letters [B, 26]
    guessed = (jax.random.uniform(kg, (B, NUM_ACTIONS)) < 0.3).astype(jnp.float32)

    # action_mask: 1 = legal action, 0 = illegal [B, 26]
    action_mask = (jax.random.uniform(km, (B, NUM_ACTIONS)) < 0.7).astype(jnp.float32)

    obs = {
        "word_state": word_state,
        "guessed_letters": guessed,
        "action_mask": action_mask,
    }

    masked_logits = hangman_sac_q_forward(obs, params)
    jax.block_until_ready(masked_logits)

    assert masked_logits.shape == (B, NUM_ACTIONS)
    assert masked_logits.dtype == jnp.float32

    # Reference check (plain JAX) to confirm the fused kernel's semantics.
    x_ref = jnp.concatenate([word_state.reshape(B, -1), guessed], axis=-1)
    w1 = jnp.concatenate([params["w1w"], params["w1g"]], axis=0)
    h = jnp.maximum(x_ref @ w1 + params["b1"], 0.0)
    f = jnp.maximum(h @ params["w2"] + params["b2"], 0.0)
    ref = f @ params["w3"] + params["b3"] + (action_mask == 0.0) * (-1.0e9)
    assert jnp.allclose(masked_logits, ref, atol=1e-3, rtol=1e-4)

    print("KERNEL_OK")
</pallas_src>

<mosaic_0001>
module attributes {stable_mosaic.version = 11 : i64} {
  func.func @hangman_q_kernel(%arg0: i32, %arg1: memref<8x432xf32, #tpu.memory_space<vmem>>, %arg2: memref<8x26xf32, #tpu.memory_space<vmem>>, %arg3: memref<8x128xf32, #tpu.memory_space<vmem>>, %arg4: memref<432x128xf32, #tpu.memory_space<vmem>>, %arg5: memref<26x128xf32, #tpu.memory_space<vmem>>, %arg6: memref<1x128xf32, #tpu.memory_space<vmem>>, %arg7: memref<128x128xf32, #tpu.memory_space<vmem>>, %arg8: memref<1x128xf32, #tpu.memory_space<vmem>>, %arg9: memref<128x128xf32, #tpu.memory_space<vmem>>, %arg10: memref<1x128xf32, #tpu.memory_space<vmem>>, %arg11: memref<8x128xf32, #tpu.memory_space<vmem>>) attributes {dimension_semantics = [#tpu.dimension_semantics<parallel>], iteration_bounds = array<i64: 1>, scalar_prefetch = 0 : i64, scratch_operands = 0 : i64, tpu.core_type = #tpu.core_type<tc>, window_params = [{transform_indices = @transform_0, window_bounds = array<i64: 8, 432>}, {transform_indices = @transform_1, window_bounds = array<i64: 8, 26>}, {transform_indices = @transform_2, window_bounds = array<i64: 8, 128>}, {pipeline_mode = #tpu.pipeline_mode<synchronous>, transform_indices = @transform_3, window_bounds = array<i64: 432, 128>}, {pipeline_mode = #tpu.pipeline_mode<synchronous>, transform_indices = @transform_4, window_bounds = array<i64: 26, 128>}, {pipeline_mode = #tpu.pipeline_mode<synchronous>, transform_indices = @transform_5, window_bounds = array<i64: 1, 128>}, {pipeline_mode = #tpu.pipeline_mode<synchronous>, transform_indices = @transform_6, window_bounds = array<i64: 128, 128>}, {pipeline_mode = #tpu.pipeline_mode<synchronous>, transform_indices = @transform_7, window_bounds = array<i64: 1, 128>}, {pipeline_mode = #tpu.pipeline_mode<synchronous>, transform_indices = @transform_8, window_bounds = array<i64: 128, 128>}, {pipeline_mode = #tpu.pipeline_mode<synchronous>, transform_indices = @transform_9, window_bounds = array<i64: 1, 128>}, {transform_indices = @transform_10, window_bounds = array<i64: 8, 128>}]} {
    %c0 = arith.constant 0 : index
    %c0_0 = arith.constant 0 : index
    %0 = vector.load %arg1[%c0, %c0_0] : memref<8x432xf32, #tpu.memory_space<vmem>>, vector<8x432xf32>
    %c0_1 = arith.constant 0 : index
    %c0_2 = arith.constant 0 : index
    %1 = vector.load %arg4[%c0_1, %c0_2] : memref<432x128xf32, #tpu.memory_space<vmem>>, vector<432x128xf32>
    %cst = arith.constant dense<0.000000e+00> : vector<8x128xf32>
    %2 = tpu.matmul %0, %1, %cst {dimension_numbers = #tpu.dot_dimension_numbers<[1], [0], [0], [1], [0, 0, 1, 1], [], []>} : vector<8x432xf32>, vector<432x128xf32>, vector<8x128xf32> -> vector<8x128xf32>
    %c0_3 = arith.constant 0 : index
    %c0_4 = arith.constant 0 : index
    %3 = vector.load %arg2[%c0_3, %c0_4] : memref<8x26xf32, #tpu.memory_space<vmem>>, vector<8x26xf32>
    %c0_5 = arith.constant 0 : index
    %c0_6 = arith.constant 0 : index
    %4 = vector.load %arg5[%c0_5, %c0_6] : memref<26x128xf32, #tpu.memory_space<vmem>>, vector<26x128xf32>
    %cst_7 = arith.constant dense<0.000000e+00> : vector<8x128xf32>
    %5 = tpu.matmul %3, %4, %cst_7 {dimension_numbers = #tpu.dot_dimension_numbers<[1], [0], [0], [1], [0, 0, 1, 1], [], []>} : vector<8x26xf32>, vector<26x128xf32>, vector<8x128xf32> -> vector<8x128xf32>
    %6 = arith.addf %2, %5 : vector<8x128xf32>
    %c0_8 = arith.constant 0 : index
    %c0_9 = arith.constant 0 : index
    %7 = vector.load %arg6[%c0_8, %c0_9] : memref<1x128xf32, #tpu.memory_space<vmem>>, vector<1x128xf32>
    %8 = vector.broadcast %7 : vector<1x128xf32> to vector<8x128xf32>
    %9 = arith.addf %6, %8 : vector<8x128xf32>
    %cst_10 = arith.constant 0.000000e+00 : f32
    %10 = vector.broadcast %cst_10 : f32 to vector<8x128xf32>
    %11 = arith.maximumf %9, %10 : vector<8x128xf32>
    %c0_11 = arith.constant 0 : index
    %c0_12 = arith.constant 0 : index
    %12 = vector.load %arg7[%c0_11, %c0_12] : memref<128x128xf32, #tpu.memory_space<vmem>>, vector<128x128xf32>
    %cst_13 = arith.constant dense<0.000000e+00> : vector<8x128xf32>
    %13 = tpu.matmul %11, %12, %cst_13 {dimension_numbers = #tpu.dot_dimension_numbers<[1], [0], [0], [1], [0, 0, 1, 1], [], []>} : vector<8x128xf32>, vector<128x128xf32>, vector<8x128xf32> -> vector<8x128xf32>
    %c0_14 = arith.constant 0 : index
    %c0_15 = arith.constant 0 : index
    %14 = vector.load %arg8[%c0_14, %c0_15] : memref<1x128xf32, #tpu.memory_space<vmem>>, vector<1x128xf32>
    %15 = vector.broadcast %14 : vector<1x128xf32> to vector<8x128xf32>
    %16 = arith.addf %13, %15 : vector<8x128xf32>
    %cst_16 = arith.constant 0.000000e+00 : f32
    %17 = vector.broadcast %cst_16 : f32 to vector<8x128xf32>
    %18 = arith.maximumf %16, %17 : vector<8x128xf32>
    %c0_17 = arith.constant 0 : index
    %c0_18 = arith.constant 0 : index
    %19 = vector.load %arg9[%c0_17, %c0_18] : memref<128x128xf32, #tpu.memory_space<vmem>>, vector<128x128xf32>
    %cst_19 = arith.constant dense<0.000000e+00> : vector<8x128xf32>
    %20 = tpu.matmul %18, %19, %cst_19 {dimension_numbers = #tpu.dot_dimension_numbers<[1], [0], [0], [1], [0, 0, 1, 1], [], []>} : vector<8x128xf32>, vector<128x128xf32>, vector<8x128xf32> -> vector<8x128xf32>
    %c0_20 = arith.constant 0 : index
    %c0_21 = arith.constant 0 : index
    %21 = vector.load %arg10[%c0_20, %c0_21] : memref<1x128xf32, #tpu.memory_space<vmem>>, vector<1x128xf32>
    %22 = vector.broadcast %21 : vector<1x128xf32> to vector<8x128xf32>
    %23 = arith.addf %20, %22 : vector<8x128xf32>
    %c0_22 = arith.constant 0 : index
    %c0_23 = arith.constant 0 : index
    %24 = vector.load %arg3[%c0_22, %c0_23] : memref<8x128xf32, #tpu.memory_space<vmem>>, vector<8x128xf32>
    %cst_24 = arith.constant 0.000000e+00 : f32
    %25 = vector.broadcast %cst_24 : f32 to vector<8x128xf32>
    %26 = arith.cmpf oeq, %24, %25 : vector<8x128xf32>
    %cst_25 = arith.constant 1.000000e+09 : f32
    %27 = vector.broadcast %cst_25 : f32 to vector<8x128xf32>
    %28 = arith.subf %23, %27 : vector<8x128xf32>
    %29 = arith.select %26, %28, %23 : vector<8x128xi1>, vector<8x128xf32>
    %c0_26 = arith.constant 0 : index
    %c0_27 = arith.constant 0 : index
    %30 = vector.load %arg11[%c0_26, %c0_27] : memref<8x128xf32, #tpu.memory_space<vmem>>, vector<8x128xf32>
    tpu.vector_store %arg11[%c0_26, %c0_27], %29 {strides = array<i32>} : memref<8x128xf32, #tpu.memory_space<vmem>>, vector<8x128xf32>,
    return
  }
  func.func @transform_0(%arg0: i32) -> (i32, i32) {
    %c0_i32 = arith.constant 0 : i32
    %c0_i32_0 = arith.constant 0 : i32
    return %arg0, %c0_i32 : i32, i32
  }
  func.func @transform_1(%arg0: i32) -> (i32, i32) {
    %c0_i32 = arith.constant 0 : i32
    %c0_i32_0 = arith.constant 0 : i32
    return %arg0, %c0_i32 : i32, i32
  }
  func.func @transform_2(%arg0: i32) -> (i32, i32) {
    %c0_i32 = arith.constant 0 : i32
    %c0_i32_0 = arith.constant 0 : i32
    return %arg0, %c0_i32 : i32, i32
  }
  func.func @transform_3(%arg0: i32) -> (i32, i32) {
    %c0_i32 = arith.constant 0 : i32
    %c0_i32_0 = arith.constant 0 : i32
    %c0_i32_1 = arith.constant 0 : i32
    return %c0_i32, %c0_i32_0 : i32, i32
  }
  func.func @transform_4(%arg0: i32) -> (i32, i32) {
    %c0_i32 = arith.constant 0 : i32
    %c0_i32_0 = arith.constant 0 : i32
    %c0_i32_1 = arith.constant 0 : i32
    return %c0_i32, %c0_i32_0 : i32, i32
  }
  func.func @transform_5(%arg0: i32) -> (i32, i32) {
    %c0_i32 = arith.constant 0 : i32
    %c0_i32_0 = arith.constant 0 : i32
    %c0_i32_1 = arith.constant 0 : i32
    return %c0_i32, %c0_i32_0 : i32, i32
  }
  func.func @transform_6(%arg0: i32) -> (i32, i32) {
    %c0_i32 = arith.constant 0 : i32
    %c0_i32_0 = arith.constant 0 : i32
    %c0_i32_1 = arith.constant 0 : i32
    return %c0_i32, %c0_i32_0 : i32, i32
  }
  func.func @transform_7(%arg0: i32) -> (i32, i32) {
    %c0_i32 = arith.constant 0 : i32
    %c0_i32_0 = arith.constant 0 : i32
    %c0_i32_1 = arith.constant 0 : i32
    return %c0_i32, %c0_i32_0 : i32, i32
  }
  func.func @transform_8(%arg0: i32) -> (i32, i32) {
    %c0_i32 = arith.constant 0 : i32
    %c0_i32_0 = arith.constant 0 : i32
    %c0_i32_1 = arith.constant 0 : i32
    return %c0_i32, %c0_i32_0 : i32, i32
  }
  func.func @transform_9(%arg0: i32) -> (i32, i32) {
    %c0_i32 = arith.constant 0 : i32
    %c0_i32_0 = arith.constant 0 : i32
    %c0_i32_1 = arith.constant 0 : i32
    return %c0_i32, %c0_i32_0 : i32, i32
  }
  func.func @transform_10(%arg0: i32) -> (i32, i32) {
    %c0_i32 = arith.constant 0 : i32
    %c0_i32_0 = arith.constant 0 : i32
    return %arg0, %c0_i32 : i32, i32
  }
}

</mosaic_0001>

<llo_original>
// kernel: tpu_custom_call.1
$region0: #{tpu_custom_call.1}
  #allocation0 [shape = 'u32[]', space=smem, size = 0x4, offset = 0x4, fixed_abs, tag = 'smem constant byte address 0x4 - core index']
  #allocation1 [shape = 'u32[72,128]{1,0:T(1,128)}', space=vmem, size = 0x9000, scoped, tag = 'internal scratch']
  %s0 = inlined_call_operand.hbm [shape: f32[8,432], index: 0, kind: input, shape index: {}]
  %s1 = inlined_call_operand.hbm [shape: f32[8,26], index: 1, kind: input, shape index: {}]
  %s2 = inlined_call_operand.hbm [shape: f32[8,128], index: 2, kind: input, shape index: {}]
  %s3 = inlined_call_operand.hbm [shape: f32[432,128], index: 3, kind: input, shape index: {}]
  %s4 = inlined_call_operand.hbm [shape: f32[26,128], index: 4, kind: input, shape index: {}]
  %s5 = inlined_call_operand.vmem [shape: f32[1,128], index: 5, kind: input, shape index: {}]
  %s6 = inlined_call_operand.hbm [shape: f32[128,128], index: 6, kind: input, shape index: {}]
  %s7 = inlined_call_operand.vmem [shape: f32[1,128], index: 7, kind: input, shape index: {}]
  %s8 = inlined_call_operand.hbm [shape: f32[128,128], index: 8, kind: input, shape index: {}]
  %s9 = inlined_call_operand.vmem [shape: f32[1,128], index: 9, kind: input, shape index: {}]
  %s10 = inlined_call_operand.hbm [shape: f32[8,128], index: 10, kind: output, shape index: {}]
  %s11 = sld [smem:[#allocation0]]
  $region78: #{tpu_custom_call.1} parent=0
    _
  %s13 = ssub.s32 1, %s11
  %s14 = scalar_select 0, %s13, %s11
  $region1: #{tpu_custom_call.1} parent=0
    #allocation2 [shape = 'u8[16384]{0}', space=vmem, size = 0x4000, scoped, tag = 'input window, operand 0, single buffered']
    #allocation3 [shape = 's32[1]{0}', space=sflag, size = 0x4, scoped, tag = 'scoped memory for tpu_custom_call.1']
    #allocation4 [shape = 's32[1]{0}', space=sflag, size = 0x4, scoped, tag = 'scoped memory for tpu_custom_call.1']
    #allocation5 [shape = 'u8[4096]{0}', space=vmem, size = 0x1000, scoped, tag = 'input window, operand 1, single buffered']
    #allocation6 [shape = 's32[1]{0}', space=sflag, size = 0x4, scoped, tag = 'scoped memory for tpu_custom_call.1']
    #allocation7 [shape = 'u8[4096]{0}', space=vmem, size = 0x1000, scoped, tag = 'input window, operand 2, single buffered']
    #allocation8 [shape = 'u8[221184]{0}', space=vmem, size = 0x36000, scoped, tag = 'input window, operand 3, single buffered']
    #allocation9 [shape = 's32[1]{0}', space=sflag, size = 0x4, scoped, tag = 'scoped memory for tpu_custom_call.1']
    #allocation10 [shape = 'u8[16384]{0}', space=vmem, size = 0x4000, scoped, tag = 'input window, operand 4, single buffered']
    #allocation11 [shape = 'u8[65536]{0}', space=vmem, size = 0x10000, scoped, tag = 'input window, operand 6, single buffered']
    #allocation12 [shape = 's32[1]{0}', space=sflag, size = 0x4, scoped, tag = 'scoped memory for tpu_custom_call.1']
    #allocation13 [shape = 'u8[65536]{0}', space=vmem, size = 0x10000, scoped, tag = 'input window, operand 8, single buffered']
    #allocation14 [shape = 'u8[4096]{0}', space=vmem, size = 0x1000, scoped, tag = 'output window, operand 0, single buffered']
    %15 = vsyncpa [#allocation3], 0
    %16 = vsyncpa [#allocation6], 0
    %17 = vsyncpa [#allocation9], 0
    %18 = vsyncpa [#allocation12], 0
    %19 = vsyncpa [#allocation4], 0
    // Predicated region
    $region2: #{tpu_custom_call.1} parent=1 // pred_check
      _
    $region3: #{tpu_custom_call.1} parent=1 // pred_check_branch
      %21 = sbr.rel (0) target = $region5
    $region4: #{tpu_custom_call.1} parent=1 // pred_region
      %23 = vsyncadd [#allocation3], 0
      %s25 = sshll.u32 %s0, 4
      %s26 = int_to_ptr.hbm [resolvable:$true] %s25
      %s27 = sshll.u32 [#allocation2], 4
      %s28 = int_to_ptr.vmem [resolvable:$true] %s27
      %30 = dma.hbm_to_vmem [thread:$0]  %s26, 512, %s28, [#allocation3]
    $region5: #{tpu_custom_call.1} parent=1 // pred_fallthru
      _
    // Predicated region
    $region6: #{tpu_custom_call.1} parent=1 // pred_check
      _
    $region7: #{tpu_custom_call.1} parent=1 // pred_check_branch
      %32 = sbr.rel (0) target = $region9
    $region8: #{tpu_custom_call.1} parent=1 // pred_region
      %34 = vsyncadd [#allocation6], 0
      %s36 = sshll.u32 %s1, 4
      %s37 = int_to_ptr.hbm [resolvable:$true] %s36
      %s38 = sshll.u32 [#allocation5], 4
      %s39 = int_to_ptr.vmem [resolvable:$true] %s38
      %41 = dma.hbm_to_vmem [thread:$0]  %s37, 128, %s39, [#allocation6]
    $region9: #{tpu_custom_call.1} parent=1 // pred_fallthru
      _
    // Predicated region
    $region10: #{tpu_custom_call.1} parent=1 // pred_check
      _
    $region11: #{tpu_custom_call.1} parent=1 // pred_check_branch
      %43 = sbr.rel (0) target = $region13
    $region12: #{tpu_custom_call.1} parent=1 // pred_region
      %45 = vsyncadd [#allocation6], 0
      %s47 = sshll.u32 %s2, 4
      %s48 = int_to_ptr.hbm [resolvable:$true] %s47
      %s49 = sshll.u32 [#allocation7], 4
      %s50 = int_to_ptr.vmem [resolvable:$true] %s49
      %52 = dma.hbm_to_vmem [thread:$0]  %s48, 128, %s50, [#allocation6]
    $region13: #{tpu_custom_call.1} parent=1 // pred_fallthru
      _
    // Predicated region
    $region14: #{tpu_custom_call.1} parent=1 // pred_check
      _
    $region15: #{tpu_custom_call.1} parent=1 // pred_check_branch
      %54 = sbr.rel (0) target = $region17
    $region16: #{tpu_custom_call.1} parent=1 // pred_region
      %56 = vsyncadd [#allocation9], 0
      %s57 = sshll.u32 %s3, 4
      %s58 = int_to_ptr.hbm [resolvable:$true] %s57
      %s59 = sshll.u32 [#allocation8], 4
      %s60 = int_to_ptr.vmem [resolvable:$true] %s59
      %65 = dma.hbm_to_vmem [thread:$0]  %s58, 6912, %s60, [#allocation9], 128, 128, 8
    $region17: #{tpu_custom_call.1} parent=1 // pred_fallthru
      _
    // Predicated region
    $region18: #{tpu_custom_call.1} parent=1 // pred_check
      _
    $region19: #{tpu_custom_call.1} parent=1 // pred_check_branch
      %67 = sbr.rel (0) target = $region21
    $region20: #{tpu_custom_call.1} parent=1 // pred_region
      %69 = vsyncadd [#allocation9], 0
      %s70 = sshll.u32 %s4, 4
      %s71 = int_to_ptr.hbm [resolvable:$true] %s70
      %s72 = sshll.u32 [#allocation10], 4
      %s73 = int_to_ptr.vmem [resolvable:$true] %s72
      %78 = dma.hbm_to_vmem [thread:$0]  %s71, 512, %s73, [#allocation9], 128, 128, 8
    $region21: #{tpu_custom_call.1} parent=1 // pred_fallthru
      _
    // Predicated region
    $region22: #{tpu_custom_call.1} parent=1 // pred_check
      _
    $region23: #{tpu_custom_call.1} parent=1 // pred_check_branch
      %80 = sbr.rel (0) target = $region25
    $region24: #{tpu_custom_call.1} parent=1 // pred_region
      _
    $region25: #{tpu_custom_call.1} parent=1 // pred_fallthru
      _
    // Predicated region
    $region26: #{tpu_custom_call.1} parent=1 // pred_check
      _
    $region27: #{tpu_custom_call.1} parent=1 // pred_check_branch
      %82 = sbr.rel (0) target = $region29
    $region28: #{tpu_custom_call.1} parent=1 // pred_region
      %84 = vsyncadd [#allocation12], 0
      %s85 = sshll.u32 %s6, 4
      %s86 = int_to_ptr.hbm [resolvable:$true] %s85
      %s87 = sshll.u32 [#allocation11], 4
      %s88 = int_to_ptr.vmem [resolvable:$true] %s87
      %93 = dma.hbm_to_vmem [thread:$0]  %s86, 2048, %s88, [#allocation12], 128, 128, 8
    $region29: #{tpu_custom_call.1} parent=1 // pred_fallthru
      _
    // Predicated region
    $region30: #{tpu_custom_call.1} parent=1 // pred_check
      _
    $region31: #{tpu_custom_call.1} parent=1 // pred_check_branch
      %95 = sbr.rel (0) target = $region33
    $region32: #{tpu_custom_call.1} parent=1 // pred_region
      _
    $region33: #{tpu_custom_call.1} parent=1 // pred_fallthru
      _
    // Predicated region
    $region34: #{tpu_custom_call.1} parent=1 // pred_check
      _
    $region35: #{tpu_custom_call.1} parent=1 // pred_check_branch
      %97 = sbr.rel (0) target = $region37
    $region36: #{tpu_custom_call.1} parent=1 // pred_region
      %99 = vsyncadd [#allocation12], 0
      %s100 = sshll.u32 %s8, 4
      %s101 = int_to_ptr.hbm [resolvable:$true] %s100
      %s102 = sshll.u32 [#allocation13], 4
      %s103 = int_to_ptr.vmem [resolvable:$true] %s102
      %108 = dma.hbm_to_vmem [thread:$0]  %s101, 2048, %s103, [#allocation12], 128, 128, 8
    $region37: #{tpu_custom_call.1} parent=1 // pred_fallthru
      _
    // Predicated region
    $region38: #{tpu_custom_call.1} parent=1 // pred_check
      _
    $region39: #{tpu_custom_call.1} parent=1 // pred_check_branch
      %110 = sbr.rel (0) target = $region41
    $region40: #{tpu_custom_call.1} parent=1 // pred_region
      _
    $region41: #{tpu_custom_call.1} parent=1 // pred_fallthru
      _
    // Predicated region
    $region42: #{tpu_custom_call.1} parent=1 // pred_check
      _
    $region43: #{tpu_custom_call.1} parent=1 // pred_check_branch
      %112 = sbr.rel (0) target = $region45
    $region44: #{tpu_custom_call.1} parent=1 // pred_region
      %114 = dma.done [#allocation3], 512
    $region45: #{tpu_custom_call.1} parent=1 // pred_fallthru
      _
    // Predicated region
    $region46: #{tpu_custom_call.1} parent=1 // pred_check
      _
    $region47: #{tpu_custom_call.1} parent=1 // pred_check_branch
      %116 = sbr.rel (0) target = $region49
    $region48: #{tpu_custom_call.1} parent=1 // pred_region
      %118 = dma.done [#allocation6], 128
    $region49: #{tpu_custom_call.1} parent=1 // pred_fallthru
      _
    // Predicated region
    $region50: #{tpu_custom_call.1} parent=1 // pred_check
      _
    $region51: #{tpu_custom_call.1} parent=1 // pred_check_branch
      %120 = sbr.rel (0) target = $region53
    $region52: #{tpu_custom_call.1} parent=1 // pred_region
      %122 = dma.done [#allocation6], 128
    $region53: #{tpu_custom_call.1} parent=1 // pred_fallthru
      _
    // Predicated region
    $region54: #{tpu_custom_call.1} parent=1 // pred_check
      _
    $region55: #{tpu_custom_call.1} parent=1 // pred_check_branch
      %124 = sbr.rel (0) target = $region57
    $region56: #{tpu_custom_call.1} parent=1 // pred_region
      %126 = dma.done [#allocation9], 6912
    $region57: #{tpu_custom_call.1} parent=1 // pred_fallthru
      _
    // Predicated region
    $region58: #{tpu_custom_call.1} parent=1 // pred_check
      _
    $region59: #{tpu_custom_call.1} parent=1 // pred_check_branch
      %128 = sbr.rel (0) target = $region61
    $region60: #{tpu_custom_call.1} parent=1 // pred_region
      %130 = dma.done [#allocation9], 512
    $region61: #{tpu_custom_call.1} parent=1 // pred_fallthru
      _
    // Predicated region
    $region62: #{tpu_custom_call.1} parent=1 // pred_check
      _
    $region63: #{tpu_custom_call.1} parent=1 // pred_check_branch
      %132 = sbr.rel (0) target = $region65
    $region64: #{tpu_custom_call.1} parent=1 // pred_region
      %134 = dma.done [#allocation12], 2048
    $region65: #{tpu_custom_call.1} parent=1 // pred_fallthru
      _
    // Predicated region
    $region66: #{tpu_custom_call.1} parent=1 // pred_check
      _
    $region67: #{tpu_custom_call.1} parent=1 // pred_check_branch
      %136 = sbr.rel (0) target = $region69
    $region68: #{tpu_custom_call.1} parent=1 // pred_region
      %138 = dma.done [#allocation12], 2048
    $region69: #{tpu_custom_call.1} parent=1 // pred_fallthru
      _
    %v139 = vld [vmem:[#allocation2] sm:$0xff]
    %v140 = vld [vmem:[#allocation2 + $0x8] sm:$0xff]
    %v141 = vld [vmem:[#allocation2 + $0x10] sm:$0xff]
    %v142 = vld [vmem:[#allocation2 + $0x18] sm:$0xff]
    %v143 = vld [vmem:[#allocation8] sm:$0xff]
    %v144 = vld [vmem:[#allocation8 + $0x8] sm:$0xff]
    %v145 = vld [vmem:[#allocation8 + $0x10] sm:$0xff]
    %v146 = vld [vmem:[#allocation8 + $0x18] sm:$0xff]
    %v147 = vld [vmem:[#allocation8 + $0x20] sm:$0xff]
    %v148 = vld [vmem:[#allocation8 + $0x28] sm:$0xff]
    %v149 = vld [vmem:[#allocation8 + $0x30] sm:$0xff]
    %v150 = vld [vmem:[#allocation8 + $0x38] sm:$0xff]
    %v151 = vld [vmem:[#allocation8 + $0x40] sm:$0xff]
    %v152 = vld [vmem:[#allocation8 + $0x48] sm:$0xff]
    %v153 = vld [vmem:[#allocation8 + $0x50] sm:$0xff]
    %v154 = vld [vmem:[#allocation8 + $0x58] sm:$0xff]
    %v155 = vld [vmem:[#allocation8 + $0x60] sm:$0xff]
    %v156 = vld [vmem:[#allocation8 + $0x68] sm:$0xff]
    %v157 = vld [vmem:[#allocation8 + $0x70] sm:$0xff]
    %v158 = vld [vmem:[#allocation8 + $0x78] sm:$0xff]
    %v159 = vld [vmem:[#allocation8 + $0x80] sm:$0xff]
    %v160 = vld [vmem:[#allocation8 + $0x88] sm:$0xff]
    %v161 = vld [vmem:[#allocation8 + $0x90] sm:$0xff]
    %v162 = vld [vmem:[#allocation8 + $0x98] sm:$0xff]
    %v163 = vld [vmem:[#allocation8 + $0xa0] sm:$0xff]
    %v164 = vld [vmem:[#allocation8 + $0xa8] sm:$0xff]
    %v165 = vld [vmem:[#allocation8 + $0xb0] sm:$0xff]
    %v166 = vld [vmem:[#allocation8 + $0xb8] sm:$0xff]
    %v167 = vld [vmem:[#allocation8 + $0xc0] sm:$0xff]
    %v168 = vld [vmem:[#allocation8 + $0xc8] sm:$0xff]
    %v169 = vld [vmem:[#allocation8 + $0xd0] sm:$0xff]
    %v170 = vld [vmem:[#allocation8 + $0xd8] sm:$0xff]
    %v171 = vld [vmem:[#allocation8 + $0xe0] sm:$0xff]
    %v172 = vld [vmem:[#allocation8 + $0xe8] sm:$0xff]
    %v173 = vld [vmem:[#allocation8 + $0xf0] sm:$0xff]
    %v174 = vld [vmem:[#allocation8 + $0xf8] sm:$0xff]
    %v175 = vld [vmem:[#allocation8 + $0x100] sm:$0xff]
    %v176 = vld [vmem:[#allocation8 + $0x108] sm:$0xff]
    %v177 = vld [vmem:[#allocation8 + $0x110] sm:$0xff]
    %v178 = vld [vmem:[#allocation8 + $0x118] sm:$0xff]
    %v179 = vld [vmem:[#allocation8 + $0x120] sm:$0xff]
    %v180 = vld [vmem:[#allocation8 + $0x128] sm:$0xff]
    %v181 = vld [vmem:[#allocation8 + $0x130] sm:$0xff]
    %v182 = vld [vmem:[#allocation8 + $0x138] sm:$0xff]
    %v183 = vld [vmem:[#allocation8 + $0x140] sm:$0xff]
    %v184 = vld [vmem:[#allocation8 + $0x148] sm:$0xff]
    %v185 = vld [vmem:[#allocation8 + $0x150] sm:$0xff]
    %v186 = vld [vmem:[#allocation8 + $0x158] sm:$0xff]
    %v187 = vld [vmem:[#allocation8 + $0x160] sm:$0xff]
    %v188 = vld [vmem:[#allocation8 + $0x168] sm:$0xff]
    %v189 = vld [vmem:[#allocation8 + $0x170] sm:$0xff]
    %v190 = vld [vmem:[#allocation8 + $0x178] sm:$0xff]
    %v191 = vld [vmem:[#allocation8 + $0x180] sm:$0xff]
    %v192 = vld [vmem:[#allocation8 + $0x188] sm:$0xff]
    %v193 = vld [vmem:[#allocation8 + $0x190] sm:$0xff]
    %v194 = vld [vmem:[#allocation8 + $0x198] sm:$0xff]
    %v195 = vld [vmem:[#allocation8 + $0x1a0] sm:$0xff]
    %v196 = vld [vmem:[#allocation8 + $0x1a8] sm:$0xff]
    %v197 = vld [vmem:[#allocation5] sm:$0xff]
    %v198 = vld [vmem:[#allocation10] sm:$0xff]
    %v199 = vld [vmem:[#allocation10 + $0x8] sm:$0xff]
    %v200 = vld [vmem:[#allocation10 + $0x10] sm:$0xff]
    %v201 = vld [vmem:[#allocation10 + $0x18] sm:$0x3]
    %vm202 = vcmask 211968
    %v204 = vsel %vm202, %v197, 0
    %vm206 = vcmask 1041408
    %v208 = vsel %vm206, %v201, 0
    %210 = vmatpush.msra.mxu0 0.0
    %211 = vmatpush.msra.mxu0 0.0
    %212 = vmatpush.msra.mxu0 0.0
    %213 = vmatpush.msra.mxu0 0.0
    %214 = vmatpush.msra.mxu0 0.0
    %215 = vmatpush.msra.mxu0 0.0
    %216 = vmatpush.msra.mxu0 0.0
    %217 = vmatpush.msra.mxu0 0.0
    %218 = vmatpush.msra.mxu0 0.0
    %219 = vmatpush.msra.mxu0 0.0
    %220 = vmatpush.msra.mxu0 0.0
    %221 = vmatpush.msra.mxu0 0.0
    %222 = vmatpush.msra.mxu0 %v208
    %223 = vmatpush.msra.mxu0 %v200
    %224 = vmatpush.msra.mxu0 %v199
    %225 = vmatpush.msra.mxu0 %v198
    %226 = vmatmul.f32.gmra.mxu0 %v204
    %v227 = vpop.f32.mrf.mxu0
    %v228 = vadd.f32 0.0, %v227
    %229 = vdwg.mxu0
    %vm230 = vcmask 392192
    %v232 = vsel %vm230, %v142, 0
    %234 = vmatpush.msra.mxu0 %v158
    %235 = vmatpush.msra.mxu0 %v157
    %236 = vmatpush.msra.mxu0 %v156
    %237 = vmatpush.msra.mxu0 %v155
    %238 = vmatpush.msra.mxu0 %v154
    %239 = vmatpush.msra.mxu0 %v153
    %240 = vmatpush.msra.mxu0 %v152
    %241 = vmatpush.msra.mxu0 %v151
    %242 = vmatpush.msra.mxu0 %v150
    %243 = vmatpush.msra.mxu0 %v149
    %244 = vmatpush.msra.mxu0 %v148
    %245 = vmatpush.msra.mxu0 %v147
    %246 = vmatpush.msra.mxu0 %v146
    %247 = vmatpush.msra.mxu0 %v145
    %248 = vmatpush.msra.mxu0 %v144
    %249 = vmatpush.msra.mxu0 %v143
    %250 = vmatmul.f32.gmra.mxu0 %v139
    %v251 = vpop.f32.mrf.mxu0
    %v252 = vadd.f32 %v228, %v251
    %253 = vdwg.mxu0
    %254 = vmatpush.msra.mxu0 %v174
    %255 = vmatpush.msra.mxu0 %v173
    %256 = vmatpush.msra.mxu0 %v172
    %257 = vmatpush.msra.mxu0 %v171
    %258 = vmatpush.msra.mxu0 %v170
    %259 = vmatpush.msra.mxu0 %v169
    %260 = vmatpush.msra.mxu0 %v168
    %261 = vmatpush.msra.mxu0 %v167
    %262 = vmatpush.msra.mxu0 %v166
    %263 = vmatpush.msra.mxu0 %v165
    %264 = vmatpush.msra.mxu0 %v164
    %265 = vmatpush.msra.mxu0 %v163
    %266 = vmatpush.msra.mxu0 %v162
    %267 = vmatpush.msra.mxu0 %v161
    %268 = vmatpush.msra.mxu0 %v160
    %269 = vmatpush.msra.mxu0 %v159
    %270 = vmatmul.f32.gmra.mxu0 %v140
    %v271 = vpop.f32.mrf.mxu0
    %v272 = vadd.f32 %v252, %v271
    %273 = vdwg.mxu0
    %274 = vmatpush.msra.mxu0 %v190
    %275 = vmatpush.msra.mxu0 %v189
    %276 = vmatpush.msra.mxu0 %v188
    %277 = vmatpush.msra.mxu0 %v187
    %278 = vmatpush.msra.mxu0 %v186
    %279 = vmatpush.msra.mxu0 %v185
    %280 = vmatpush.msra.mxu0 %v184
    %281 = vmatpush.msra.mxu0 %v183
    %282 = vmatpush.msra.mxu0 %v182
    %283 = vmatpush.msra.mxu0 %v181
    %284 = vmatpush.msra.mxu0 %v180
    %285 = vmatpush.msra.mxu0 %v179
    %286 = vmatpush.msra.mxu0 %v178
    %287 = vmatpush.msra.mxu0 %v177
    %288 = vmatpush.msra.mxu0 %v176
    %289 = vmatpush.msra.mxu0 %v175
    %290 = vmatmul.f32.gmra.mxu0 %v141
    %v291 = vpop.f32.mrf.mxu0
    %v292 = vadd.f32 %v272, %v291
    %293 = vdwg.mxu0
    %294 = vmatpush.msra.mxu0 0.0
    %295 = vmatpush.msra.mxu0 0.0
    %296 = vmatpush.msra.mxu0 0.0
    %297 = vmatpush.msra.mxu0 0.0
    %298 = vmatpush.msra.mxu0 0.0
    %299 = vmatpush.msra.mxu0 0.0
    %300 = vmatpush.msra.mxu0 0.0
    %301 = vmatpush.msra.mxu0 0.0
    %302 = vmatpush.msra.mxu0 0.0
    %303 = vmatpush.msra.mxu0 0.0
    %304 = vmatpush.msra.mxu0 %v196
    %305 = vmatpush.msra.mxu0 %v195
    %306 = vmatpush.msra.mxu0 %v194
    %307 = vmatpush.msra.mxu0 %v193
    %308 = vmatpush.msra.mxu0 %v192
    %309 = vmatpush.msra.mxu0 %v191
    %310 = vmatmul.f32.gmra.mxu0 %v232
    %v311 = vpop.f32.mrf.mxu0
    %v312 = vadd.f32 %v292, %v311
    %313 = vdwg.mxu0
    %v314 = vld [vmem:[%s5] sm:$0x1]
    %v316 = vperm.slane %v314, 0
    %v318 = vadd.f32 %v312, %v316
    %v319 = vmax.f32 %v318, 0.0
    %v320 = vld [vmem:[#allocation11] sm:$0xff]
    %v321 = vld [vmem:[#allocation11 + $0x8] sm:$0xff]
    %v322 = vld [vmem:[#allocation11 + $0x10] sm:$0xff]
    %v323 = vld [vmem:[#allocation11 + $0x18] sm:$0xff]
    %v324 = vld [vmem:[#allocation11 + $0x20] sm:$0xff]
    %v325 = vld [vmem:[#allocation11 + $0x28] sm:$0xff]
    %v326 = vld [vmem:[#allocation11 + $0x30] sm:$0xff]
    %v327 = vld [vmem:[#allocation11 + $0x38] sm:$0xff]
    %v328 = vld [vmem:[#allocation11 + $0x40] sm:$0xff]
    %v329 = vld [vmem:[#allocation11 + $0x48] sm:$0xff]
    %v330 = vld [vmem:[#allocation11 + $0x50] sm:$0xff]
    %v331 = vld [vmem:[#allocation11 + $0x58] sm:$0xff]
    %v332 = vld [vmem:[#allocation11 + $0x60] sm:$0xff]
    %v333 = vld [vmem:[#allocation11 + $0x68] sm:$0xff]
    %v334 = vld [vmem:[#allocation11 + $0x70] sm:$0xff]
    %v335 = vld [vmem:[#allocation11 + $0x78] sm:$0xff]
    %v336 = vld [vmem:[%s7] sm:$0x1]
    %v338 = vperm.slane %v336, 0
    %340 = vmatpush.msra.mxu0 %v335
    %341 = vmatpush.msra.mxu0 %v334
    %342 = vmatpush.msra.mxu0 %v333
    %343 = vmatpush.msra.mxu0 %v332
    %344 = vmatpush.msra.mxu0 %v331
    %345 = vmatpush.msra.mxu0 %v330
    %346 = vmatpush.msra.mxu0 %v329
    %347 = vmatpush.msra.mxu0 %v328
    %348 = vmatpush.msra.mxu0 %v327
    %349 = vmatpush.msra.mxu0 %v326
    %350 = vmatpush.msra.mxu0 %v325
    %351 = vmatpush.msra.mxu0 %v324
    %352 = vmatpush.msra.mxu0 %v323
    %353 = vmatpush.msra.mxu0 %v322
    %354 = vmatpush.msra.mxu0 %v321
    %355 = vmatpush.msra.mxu0 %v320
    %356 = vmatmul.f32.gmra.mxu0 %v319
    %v357 = vpop.f32.mrf.mxu0
    %v358 = vadd.f32 %v338, %v357
    %359 = vdwg.mxu0
    %v360 = vmax.f32 %v358, 0.0
    %v361 = vld [vmem:[#allocation13] sm:$0xff]
    %v362 = vld [vmem:[#allocation13 + $0x8] sm:$0xff]
    %v363 = vld [vmem:[#allocation13 + $0x10] sm:$0xff]
    %v364 = vld [vmem:[#allocation13 + $0x18] sm:$0xff]
    %v365 = vld [vmem:[#allocation13 + $0x20] sm:$0xff]
    %v366 = vld [vmem:[#allocation13 + $0x28] sm:$0xff]
    %v367 = vld [vmem:[#allocation13 + $0x30] sm:$0xff]
    %v368 = vld [vmem:[#allocation13 + $0x38] sm:$0xff]
    %v369 = vld [vmem:[#allocation13 + $0x40] sm:$0xff]
    %v370 = vld [vmem:[#allocation13 + $0x48] sm:$0xff]
    %v371 = vld [vmem:[#allocation13 + $0x50] sm:$0xff]
    %v372 = vld [vmem:[#allocation13 + $0x58] sm:$0xff]
    %v373 = vld [vmem:[#allocation13 + $0x60] sm:$0xff]
    %v374 = vld [vmem:[#allocation13 + $0x68] sm:$0xff]
    %v375 = vld [vmem:[#allocation13 + $0x70] sm:$0xff]
    %v376 = vld [vmem:[#allocation13 + $0x78] sm:$0xff]
    %v377 = vld [vmem:[%s9] sm:$0x1]
    %v379 = vperm.slane %v377, 0
    %381 = vmatpush.msra.mxu0 %v376
    %382 = vmatpush.msra.mxu0 %v375
    %383 = vmatpush.msra.mxu0 %v374
    %384 = vmatpush.msra.mxu0 %v373
    %385 = vmatpush.msra.mxu0 %v372
    %386 = vmatpush.msra.mxu0 %v371
    %387 = vmatpush.msra.mxu0 %v370
    %388 = vmatpush.msra.mxu0 %v369
    %389 = vmatpush.msra.mxu0 %v368
    %390 = vmatpush.msra.mxu0 %v367
    %391 = vmatpush.msra.mxu0 %v366
    %392 = vmatpush.msra.mxu0 %v365
    %393 = vmatpush.msra.mxu0 %v364
    %394 = vmatpush.msra.mxu0 %v363
    %395 = vmatpush.msra.mxu0 %v362
    %396 = vmatpush.msra.mxu0 %v361
    %397 = vmatmul.f32.gmra.mxu0 %v360
    %v398 = vpop.f32.mrf.mxu0
    %v399 = vadd.f32 %v379, %v398
    %400 = vdwg.mxu0
    %v401 = vld [vmem:[#allocation7] sm:$0xff]
    %vm402 = vcmp.eq.f32.partialorder %v401, 0.0
    %v403 = vsub.f32 %v399, 1e+09
    %v404 = vsel %vm402, %v403, %v399
    %405 = vst [vmem:[#allocation14] sm:$0xff] %v404
    // Predicated region
    $region70: #{tpu_custom_call.1} parent=1 // pred_check
      _
    $region71: #{tpu_custom_call.1} parent=1 // pred_check_branch
      %407 = sbr.rel (0) target = $region73
    $region72: #{tpu_custom_call.1} parent=1 // pred_region
      %409 = vsyncadd [#allocation4], 0
      %s411 = sshll.u32 [#allocation14], 4
      %s412 = int_to_ptr.vmem [resolvable:$true] %s411
      %s413 = sshll.u32 %s10, 4
      %s414 = int_to_ptr.hbm [resolvable:$true] %s413
      %416 = dma.vmem_to_hbm [thread:$0]  %s412, 128, %s414, [#allocation4]
    $region73: #{tpu_custom_call.1} parent=1 // pred_fallthru
      _
    // Predicated region
    $region74: #{tpu_custom_call.1} parent=1 // pred_check
      _
    $region75: #{tpu_custom_call.1} parent=1 // pred_check_branch
      %418 = sbr.rel (0) target = $region77
    $region76: #{tpu_custom_call.1} parent=1 // pred_region
      %420 = dma.done [#allocation4], 128
    $region77: #{tpu_custom_call.1} parent=1 // pred_fallthru
      _
    %421 = vsyncpa [#allocation3], 1
    %422 = vsyncpa [#allocation6], 1
    %423 = vsyncpa [#allocation9], 1
    %424 = vsyncpa [#allocation12], 1
    %425 = vsyncpa [#allocation4], 1

</llo_original>
